<compile_context>
chip_gen: v6e
topology: v6e:2x2x1
jax: 0.10.0
libtpu: 0.0.40
codegen_flags: <defaults>
</compile_context>

<pallas_src>
import math

import jax
import jax.numpy as jnp
from jax.experimental import pallas as pl
from jax.experimental.pallas import tpu as pltpu


# ----------------------------------------------------------------------------
# Pallas kernel: one grid step == one (batch_block, seq_block, D) tile.
# ----------------------------------------------------------------------------
def _pos_enc_kernel(x_ref, pe_ref, o_ref):
    # x_ref: (bb, tS, D), pe_ref: (tS, D) -> broadcast over the batch block.
    # TODO(synk): training-mode nn.Dropout (stochastic masking) is not
    # implemented; inference-mode dropout (p=0 / eval) is identity.
    o_ref[...] = x_ref[...] + pe_ref[...][None, :, :]


# ----------------------------------------------------------------------------
# PE buffer construction (same formula as the torch module's register_buffer).
# ----------------------------------------------------------------------------
def build_pe_table(d_model, max_len=5000, dtype=jnp.float32):
    assert d_model % 2 == 0, "d_model must be even (as in the torch module)"
    position = jnp.arange(max_len, dtype=jnp.float32)[:, None]          # (L, 1)
    div_term = jnp.exp(jnp.arange(0, d_model, 2, dtype=jnp.float32)
                       * (-math.log(10000.0) / d_model))                # (D/2,)
    angles = position * div_term                                        # (L, D/2)
    pe = jnp.zeros((max_len, d_model), jnp.float32)
    pe = pe.at[:, 0::2].set(jnp.sin(angles))
    pe = pe.at[:, 1::2].set(jnp.cos(angles))
    return pe.astype(dtype)                                             # (L, D)


# ----------------------------------------------------------------------------
# Byte-budgeted (batch, seq) tile selection.
# ----------------------------------------------------------------------------
def _pick_tiles(B, S, D, itemsize, block_bytes):
    """Pick (batch_block, seq_block) so one x block is <= block_bytes.

    seq_block is a multiple of the dtype's sublane tiling (8 f32 / 16 bf16 /
    32 int8) or the full S; batch_block then fills any remaining budget (only
    relevant when a whole (S, D) slab is tiny)."""
    sublane = {4: 8, 2: 16, 1: 32}.get(itemsize, 8)
    row_bytes = D * itemsize
    rows_budget = max(sublane, block_bytes // row_bytes)
    if S <= rows_budget or (S % sublane) != 0:
        tS = S                                   # small / unaligned seq: full extent
    else:
        tS = (rows_budget // sublane) * sublane  # sublane-aligned, byte-budgeted
    slab_bytes = max(1, tS * row_bytes)
    bb = max(1, min(B, block_bytes // slab_bytes))
    return bb, tS


# ----------------------------------------------------------------------------
# Wrapper: 2D grid over (seq blocks, batch blocks); batch is innermost so the
# PE tile stays resident in VMEM across batch steps.
# ----------------------------------------------------------------------------
def positional_encoding_forward(x, pe, *, block_bytes=2 << 20, donate_x=False):
    B, S, D = x.shape
    assert pe.shape[0] >= S and pe.shape[1] == D
    # mirrors self.pe[:, :x.size(1)]; cast once to the activation dtype
    pe_s = pe[:S].astype(x.dtype)

    itemsize = jnp.dtype(x.dtype).itemsize
    bb, tS = _pick_tiles(B, S, D, itemsize, block_bytes)
    grid = (pl.cdiv(S, tS), pl.cdiv(B, bb))      # batch innermost (last axis)

    kwargs = {}
    if donate_x:
        # In-place-friendly elementwise add: reuse x's buffer for the output
        # when the caller donates x.
        kwargs["input_output_aliases"] = {0: 0}

    return pl.pallas_call(
        _pos_enc_kernel,
        out_shape=jax.ShapeDtypeStruct((B, S, D), x.dtype),
        grid=grid,
        in_specs=[
            pl.BlockSpec((bb, tS, D), lambda s, b: (b, s, 0)),   # x block
            pl.BlockSpec((tS, D), lambda s, b: (s, 0)),          # PE tile (reused over b)
        ],
        out_specs=pl.BlockSpec((bb, tS, D), lambda s, b: (b, s, 0)),
        compiler_params=pltpu.CompilerParams(
            dimension_semantics=("parallel", "parallel")),
        **kwargs,
    )(x, pe_s)


# ----------------------------------------------------------------------------
# Pure-JAX reference for validation.
# ----------------------------------------------------------------------------
def positional_encoding_reference(x, pe):
    S = x.shape[1]
    return x + pe[:S].astype(x.dtype)[None, :, :]


if __name__ == "__main__":
    # Small shapes consistent with the module: (batch, seq, d_model).
    # d_model=128 keeps the last dim lane-dense (full 128-lane stores).
    B, S, D = 4, 16, 128
    MAX_LEN = 64          # >= S, stands in for the module's max_len=5000

    root = jax.random.PRNGKey(0)
    x = jax.random.normal(root, (B, S, D), jnp.float32)
    pe = build_pe_table(D, max_len=MAX_LEN)
    ref = positional_encoding_reference(x, pe)

    # 1) Default byte budget: the ~32 KiB demo input collapses to one block
    #    (no per-step pipeline overhead where it would dominate).
    out = jax.block_until_ready(positional_encoding_forward(x, pe))
    assert out.shape == (B, S, D)
    assert jnp.allclose(out, ref, atol=1e-6, rtol=1e-6)

    # 2) Force the tiled (seq, batch) path -- grid=(2, 4) -- to exercise the
    #    pipelined / PE-reuse layout that large shapes would use.
    out_tiled = jax.block_until_ready(
        positional_encoding_forward(x, pe, block_bytes=8 * D * 4))
    assert jnp.allclose(out_tiled, ref, atol=1e-6, rtol=1e-6)

    # 3) bf16 activations: the wrapper casts pe to the activation dtype, so
    #    the store dtype matches the out_ref and PE DMA bytes are halved.
    x_bf16 = x.astype(jnp.bfloat16)
    out_bf16 = jax.block_until_ready(
        positional_encoding_forward(x_bf16, pe, block_bytes=8 * D * 4))
    ref_bf16 = positional_encoding_reference(x_bf16, pe)
    assert jnp.allclose(out_bf16.astype(jnp.float32),
                        ref_bf16.astype(jnp.float32), atol=1e-2, rtol=1e-2)

    print("KERNEL_OK")
</pallas_src>

<mosaic_0001>
module attributes {stable_mosaic.version = 11 : i64} {
  func.func @_pos_enc_kernel(%arg0: i32, %arg1: i32, %arg2: memref<4x16x128xf32, #tpu.memory_space<vmem>>, %arg3: memref<16x128xf32, #tpu.memory_space<vmem>>, %arg4: memref<4x16x128xf32, #tpu.memory_space<vmem>>) attributes {dimension_semantics = [#tpu.dimension_semantics<parallel>, #tpu.dimension_semantics<parallel>], iteration_bounds = array<i64: 1, 1>, scalar_prefetch = 0 : i64, scratch_operands = 0 : i64, tpu.core_type = #tpu.core_type<tc>, window_params = [{transform_indices = @transform_0, window_bounds = array<i64: 4, 16, 128>}, {transform_indices = @transform_1, window_bounds = array<i64: 16, 128>}, {transform_indices = @transform_2, window_bounds = array<i64: 4, 16, 128>}]} {
    %c0 = arith.constant 0 : index
    %c0_0 = arith.constant 0 : index
    %c0_1 = arith.constant 0 : index
    %0 = vector.load %arg2[%c0, %c0_0, %c0_1] : memref<4x16x128xf32, #tpu.memory_space<vmem>>, vector<4x16x128xf32>
    %c0_2 = arith.constant 0 : index
    %c0_3 = arith.constant 0 : index
    %1 = vector.load %arg3[%c0_2, %c0_3] : memref<16x128xf32, #tpu.memory_space<vmem>>, vector<16x128xf32>
    %2 = vector.shape_cast %1 : vector<16x128xf32> to vector<1x16x128xf32>
    %3 = vector.broadcast %2 : vector<1x16x128xf32> to vector<4x16x128xf32>
    %4 = arith.addf %0, %3 : vector<4x16x128xf32>
    %c0_4 = arith.constant 0 : index
    %c0_5 = arith.constant 0 : index
    %c0_6 = arith.constant 0 : index
    %5 = vector.load %arg4[%c0_4, %c0_5, %c0_6] : memref<4x16x128xf32, #tpu.memory_space<vmem>>, vector<4x16x128xf32>
    tpu.vector_store %arg4[%c0_4, %c0_5, %c0_6], %4 {strides = array<i32>} : memref<4x16x128xf32, #tpu.memory_space<vmem>>, vector<4x16x128xf32>,
    return
  }
  func.func @transform_0(%arg0: i32, %arg1: i32) -> (i32, i32, i32) {
    %c0_i32 = arith.constant 0 : i32
    %c0_i32_0 = arith.constant 0 : i32
    return %arg1, %arg0, %c0_i32 : i32, i32, i32
  }
  func.func @transform_1(%arg0: i32, %arg1: i32) -> (i32, i32) {
    %c0_i32 = arith.constant 0 : i32
    %c0_i32_0 = arith.constant 0 : i32
    return %arg0, %c0_i32 : i32, i32
  }
  func.func @transform_2(%arg0: i32, %arg1: i32) -> (i32, i32, i32) {
    %c0_i32 = arith.constant 0 : i32
    %c0_i32_0 = arith.constant 0 : i32
    return %arg1, %arg0, %c0_i32 : i32, i32, i32
  }
}

</mosaic_0001>

<llo_original>
// kernel: tpu_custom_call.1
$region0: #{tpu_custom_call.1}
  #allocation0 [shape = 'u32[]', space=smem, size = 0x4, offset = 0x4, fixed_abs, tag = 'smem constant byte address 0x4 - core index']
  #allocation1 [shape = 'u32[144,128]{1,0:T(1,128)}', space=vmem, size = 0x12000, scoped, tag = 'internal scratch']
  %s0 = inlined_call_operand.hbm [shape: f32[4,16,128], index: 0, kind: input, shape index: {}]
  %s1 = inlined_call_operand.hbm [shape: f32[16,128], index: 1, kind: input, shape index: {}]
  %s2 = inlined_call_operand.hbm [shape: f32[4,16,128], index: 2, kind: output, shape index: {}]
  %s3 = sld [smem:[#allocation0]]
  $region26: #{tpu_custom_call.1} parent=0
    _
  %s5 = ssub.s32 1, %s3
  %s6 = scalar_select 0, %s5, %s3
  $region1: #{tpu_custom_call.1} parent=0
    #allocation2 [shape = 'u8[32768]{0}', space=vmem, size = 0x8000, scoped, tag = 'input window, operand 0, single buffered']
    #allocation3 [shape = 's32[1]{0}', space=sflag, size = 0x4, scoped, tag = 'scoped memory for tpu_custom_call.1']
    #allocation4 [shape = 's32[1]{0}', space=sflag, size = 0x4, scoped, tag = 'scoped memory for tpu_custom_call.1']
    #allocation5 [shape = 'u8[8192]{0}', space=vmem, size = 0x2000, scoped, tag = 'input window, operand 1, single buffered']
    #allocation6 [shape = 's32[1]{0}', space=sflag, size = 0x4, scoped, tag = 'scoped memory for tpu_custom_call.1']
    #allocation7 [shape = 'u8[32768]{0}', space=vmem, size = 0x8000, scoped, tag = 'output window, operand 0, single buffered']
    %7 = vsyncpa [#allocation3], 0
    %8 = vsyncpa [#allocation6], 0
    %9 = vsyncpa [#allocation4], 0
    // Predicated region
    $region2: #{tpu_custom_call.1} parent=1 // pred_check
      _
    $region3: #{tpu_custom_call.1} parent=1 // pred_check_branch
      %11 = sbr.rel (0) target = $region5
    $region4: #{tpu_custom_call.1} parent=1 // pred_region
      %s13 = ssub.s32 1024, 1024
      %14 = vsyncadd [#allocation3], %s13
      %s15 = sshll.u32 [#allocation2], 4
      %s16 = int_to_ptr.vmem [resolvable:$true] %s15
      %21 = dma.hbm_to_vmem [thread:$0]  %s0, 1024, %s16, [#allocation3], 128, 128, 8
    $region5: #{tpu_custom_call.1} parent=1 // pred_fallthru
      _
    // Predicated region
    $region6: #{tpu_custom_call.1} parent=1 // pred_check
      _
    $region7: #{tpu_custom_call.1} parent=1 // pred_check_branch
      %23 = sbr.rel (0) target = $region9
    $region8: #{tpu_custom_call.1} parent=1 // pred_region
      %s25 = ssub.s32 256, 256
      %26 = vsyncadd [#allocation6], %s25
      %s27 = sshll.u32 [#allocation5], 4
      %s28 = int_to_ptr.vmem [resolvable:$true] %s27
      %33 = dma.hbm_to_vmem [thread:$0]  %s1, 256, %s28, [#allocation6], 128, 128, 8
    $region9: #{tpu_custom_call.1} parent=1 // pred_fallthru
      _
    // Predicated region
    $region10: #{tpu_custom_call.1} parent=1 // pred_check
      _
    $region11: #{tpu_custom_call.1} parent=1 // pred_check_branch
      %35 = sbr.rel (0) target = $region13
    $region12: #{tpu_custom_call.1} parent=1 // pred_region
      %36 = dma.done [#allocation3], 1024
    $region13: #{tpu_custom_call.1} parent=1 // pred_fallthru
      _
    // Predicated region
    $region14: #{tpu_custom_call.1} parent=1 // pred_check
      _
    $region15: #{tpu_custom_call.1} parent=1 // pred_check_branch
      %38 = sbr.rel (0) target = $region17
    $region16: #{tpu_custom_call.1} parent=1 // pred_region
      %39 = dma.done [#allocation6], 256
    $region17: #{tpu_custom_call.1} parent=1 // pred_fallthru
      _
    %v40 = vld [vmem:[#allocation2] sm:$0xff]
    %v41 = vld [vmem:[#allocation2 + $0x8] sm:$0xff]
    %v42 = vld [vmem:[#allocation2 + $0x10] sm:$0xff]
    %v43 = vld [vmem:[#allocation2 + $0x18] sm:$0xff]
    %v44 = vld [vmem:[#allocation2 + $0x20] sm:$0xff]
    %v45 = vld [vmem:[#allocation2 + $0x28] sm:$0xff]
    %v46 = vld [vmem:[#allocation2 + $0x30] sm:$0xff]
    %v47 = vld [vmem:[#allocation2 + $0x38] sm:$0xff]
    %v48 = vld [vmem:[#allocation5] sm:$0xff]
    %v49 = vld [vmem:[#allocation5 + $0x8] sm:$0xff]
    %v50 = vadd.f32 %v40, %v48
    %v51 = vadd.f32 %v41, %v49
    %v52 = vadd.f32 %v42, %v48
    %v53 = vadd.f32 %v43, %v49
    %v54 = vadd.f32 %v44, %v48
    %v55 = vadd.f32 %v45, %v49
    %v56 = vadd.f32 %v46, %v48
    %v57 = vadd.f32 %v47, %v49
    %58 = vst [vmem:[#allocation7] sm:$0xff] %v50
    %59 = vst [vmem:[#allocation7 + $0x8] sm:$0xff] %v51
    %60 = vst [vmem:[#allocation7 + $0x10] sm:$0xff] %v52
    %61 = vst [vmem:[#allocation7 + $0x18] sm:$0xff] %v53
    %62 = vst [vmem:[#allocation7 + $0x20] sm:$0xff] %v54
    %63 = vst [vmem:[#allocation7 + $0x28] sm:$0xff] %v55
    %64 = vst [vmem:[#allocation7 + $0x30] sm:$0xff] %v56
    %65 = vst [vmem:[#allocation7 + $0x38] sm:$0xff] %v57
    // Predicated region
    $region18: #{tpu_custom_call.1} parent=1 // pred_check
      _
    $region19: #{tpu_custom_call.1} parent=1 // pred_check_branch
      %67 = sbr.rel (0) target = $region21
    $region20: #{tpu_custom_call.1} parent=1 // pred_region
      %s69 = ssub.s32 1024, 1024
      %70 = vsyncadd [#allocation4], %s69
      %s71 = sshll.u32 [#allocation7], 4
      %s72 = int_to_ptr.vmem [resolvable:$true] %s71
      %77 = dma.vmem_to_hbm [thread:$0]  %s72, 1024, %s2, [#allocation4], 128, 128, 8
    $region21: #{tpu_custom_call.1} parent=1 // pred_fallthru
      _
    // Predicated region
    $region22: #{tpu_custom_call.1} parent=1 // pred_check
      _
    $region23: #{tpu_custom_call.1} parent=1 // pred_check_branch
      %79 = sbr.rel (0) target = $region25
    $region24: #{tpu_custom_call.1} parent=1 // pred_region
      %80 = dma.done [#allocation4], 1024
    $region25: #{tpu_custom_call.1} parent=1 // pred_fallthru
      _
    %81 = vsyncpa [#allocation3], 1
    %82 = vsyncpa [#allocation6], 1
    %83 = vsyncpa [#allocation4], 1

</llo_original>
